<compile_context>
chip_gen: v6e
topology: v6e:2x2x1
jax: 0.10.0
libtpu: 0.0.40
codegen_flags: <defaults>
</compile_context>

<pallas_src>
import functools

import jax
import jax.numpy as jnp
from jax import lax
from jax.experimental import pallas as pl
from jax.experimental.pallas import tpu as pltpu


def _triplet_loss_kernel(a_ref, p_ref, n_ref, o_ref, acc_ref, *,
                         margin, batch, tile_rows):
    i = pl.program_id(0)

    @pl.when(i == 0)
    def _():
        acc_ref[0, 0] = jnp.float32(0.0)

    a = a_ref[...]
    # Fused reduction: ||a-p||^2 - ||a-n||^2 in a single cross-lane sum.
    diff = (a - p_ref[...]) ** 2 - (a - n_ref[...]) ** 2          # (TB, D)
    per_row = jnp.sum(diff, axis=1, keepdims=True) + margin       # (TB, 1)
    losses = jnp.maximum(per_row, 0.0)                            # (TB, 1)

    # Mask rows beyond the true batch size (partial last tile).
    row = i * tile_rows + lax.broadcasted_iota(jnp.int32, (tile_rows, 1), 0)
    losses = jnp.where(row < batch, losses, 0.0)

    # Accumulate running SUM in SMEM; divide by true B only at the end.
    acc_ref[0, 0] += jnp.sum(losses)

    @pl.when(i == pl.num_programs(0) - 1)
    def _():
        o_ref[0, 0] = acc_ref[0, 0] / jnp.float32(batch)


def _pick_tile_rows(B, D, itemsize=4, budget_bytes=12 * 1024 * 1024):
    # Per-grid-step VMEM footprint = 3 inputs x 2 pipeline buffers x TB*D*itemsize.
    # 12 MiB budget keeps comfortable headroom under the default scoped VMEM
    # limit on every generation (16 MiB v5e, 32 MiB v6e/v7x) while still giving
    # large enough tiles (~85% of HBM roofline needs ~512+ rows at modest D).
    max_rows = budget_bytes // (6 * itemsize * max(D, 1))
    tb = int(min(max_rows, 1024))
    tb = max(8, (tb // 8) * 8)            # f32 sublane multiple
    b_pad = ((B + 7) // 8) * 8            # never exceed (padded) batch
    return min(tb, b_pad)


def triplet_loss(anchor, positive, negative, margin=1.0):
    anchor = anchor.astype(jnp.float32)
    positive = positive.astype(jnp.float32)
    negative = negative.astype(jnp.float32)
    B, D = anchor.shape

    tb = _pick_tile_rows(B, D)
    grid = (pl.cdiv(B, tb),)

    in_spec = pl.BlockSpec((tb, D), lambda i: (i, 0))
    out = pl.pallas_call(
        functools.partial(_triplet_loss_kernel,
                          margin=float(margin), batch=B, tile_rows=tb),
        grid=grid,
        in_specs=[in_spec, in_spec, in_spec],
        out_specs=pl.BlockSpec((1, 1), lambda i: (0, 0),
                               memory_space=pltpu.MemorySpace.SMEM),
        out_shape=jax.ShapeDtypeStruct((1, 1), jnp.float32),
        scratch_shapes=[pltpu.SMEM((1, 1), jnp.float32)],
        compiler_params=pltpu.CompilerParams(
            # Batch axis carries the resident scalar accumulator -> reduction.
            dimension_semantics=("arbitrary",),
        ),
    )(anchor, positive, negative)
    return out[0, 0]


if __name__ == "__main__":
    key = jax.random.PRNGKey(0)
    k1, k2, k3 = jax.random.split(key, 3)
    B, D = 8, 32
    anchor = jax.random.normal(k1, (B, D), dtype=jnp.float32)
    positive = jax.random.normal(k2, (B, D), dtype=jnp.float32)
    negative = jax.random.normal(k3, (B, D), dtype=jnp.float32)

    loss = jax.block_until_ready(triplet_loss(anchor, positive, negative, margin=1.0))

    # Pure-JAX reference (same semantics as the PyTorch module).
    dp = jnp.sum((anchor - positive) ** 2, axis=1)
    dn = jnp.sum((anchor - negative) ** 2, axis=1)
    ref = jnp.mean(jnp.maximum(dp - dn + 1.0, 0.0))
    assert jnp.allclose(loss, ref, atol=1e-5, rtol=1e-5), (loss, ref)

    print("KERNEL_OK")
</pallas_src>

<mosaic_0001>
module attributes {stable_mosaic.version = 11 : i64} {
  func.func @_triplet_loss_kernel(%arg0: i32, %arg1: memref<8x32xf32, #tpu.memory_space<vmem>>, %arg2: memref<8x32xf32, #tpu.memory_space<vmem>>, %arg3: memref<8x32xf32, #tpu.memory_space<vmem>>, %arg4: memref<1x1xf32, #tpu.memory_space<smem>>, %arg5: memref<1x1xf32, #tpu.memory_space<smem>>) attributes {dimension_semantics = [#tpu.dimension_semantics<arbitrary>], iteration_bounds = array<i64: 1>, scalar_prefetch = 0 : i64, scratch_operands = 1 : i64, tpu.core_type = #tpu.core_type<tc>, window_params = [{transform_indices = @transform_0, window_bounds = array<i64: 8, 32>}, {transform_indices = @transform_1, window_bounds = array<i64: 8, 32>}, {transform_indices = @transform_2, window_bounds = array<i64: 8, 32>}, {transform_indices = @transform_3, window_bounds = array<i64: 1, 1>}]} {
    %c0_i32 = arith.constant 0 : i32
    %0 = arith.cmpi eq, %arg0, %c0_i32 : i32
    %1 = arith.extui %0 : i1 to i32
    %c0_i32_0 = arith.constant 0 : i32
    %2 = arith.cmpi ne, %1, %c0_i32_0 : i32
    scf.if %2 {
      %cst_17 = arith.constant 0.000000e+00 : f32
      %c0_18 = arith.constant 0 : index
      %c0_19 = arith.constant 0 : index
      %35 = memref.load %arg5[%c0_18, %c0_19] : memref<1x1xf32, #tpu.memory_space<smem>>
      memref.store %cst_17, %arg5[%c0_18, %c0_19] : memref<1x1xf32, #tpu.memory_space<smem>>
    } else {
    }
    %c0 = arith.constant 0 : index
    %c0_1 = arith.constant 0 : index
    %3 = vector.load %arg1[%c0, %c0_1] : memref<8x32xf32, #tpu.memory_space<vmem>>, vector<8x32xf32>
    %c0_2 = arith.constant 0 : index
    %c0_3 = arith.constant 0 : index
    %4 = vector.load %arg2[%c0_2, %c0_3] : memref<8x32xf32, #tpu.memory_space<vmem>>, vector<8x32xf32>
    %5 = arith.subf %3, %4 : vector<8x32xf32>
    %6 = arith.mulf %5, %5 : vector<8x32xf32>
    %c0_4 = arith.constant 0 : index
    %c0_5 = arith.constant 0 : index
    %7 = vector.load %arg3[%c0_4, %c0_5] : memref<8x32xf32, #tpu.memory_space<vmem>>, vector<8x32xf32>
    %8 = arith.subf %3, %7 : vector<8x32xf32>
    %9 = arith.mulf %8, %8 : vector<8x32xf32>
    %10 = arith.subf %6, %9 : vector<8x32xf32>
    %cst = arith.constant dense<0.000000e+00> : vector<8xf32>
    %11 = vector.multi_reduction <add>, %10, %cst [1] : vector<8x32xf32> to vector<8xf32>
    %12 = vector.shape_cast %11 : vector<8xf32> to vector<8x1xf32>
    %cst_6 = arith.constant 1.000000e+00 : f32
    %13 = vector.broadcast %cst_6 : f32 to vector<8x1xf32>
    %14 = arith.addf %12, %13 : vector<8x1xf32>
    %cst_7 = arith.constant 0.000000e+00 : f32
    %15 = vector.broadcast %cst_7 : f32 to vector<8x1xf32>
    %16 = arith.maximumf %14, %15 : vector<8x1xf32>
    %c8_i32 = arith.constant 8 : i32
    %17 = arith.muli %arg0, %c8_i32 : i32
    %18 = tpu.iota {dimensions = array<i32: 0>} : vector<8x1xi32>
    %19 = vector.broadcast %17 : i32 to vector<8x1xi32>
    %20 = arith.addi %19, %18 : vector<8x1xi32>
    %c8_i32_8 = arith.constant 8 : i32
    %21 = vector.broadcast %c8_i32_8 : i32 to vector<8x1xi32>
    %22 = arith.cmpi slt, %20, %21 : vector<8x1xi32>
    %cst_9 = arith.constant 0.000000e+00 : f32
    %23 = vector.broadcast %cst_9 : f32 to vector<8x1xf32>
    %24 = arith.select %22, %16, %23 : vector<8x1xi1>, vector<8x1xf32>
    %c0_10 = arith.constant 0 : index
    %c0_11 = arith.constant 0 : index
    %25 = memref.load %arg5[%c0_10, %c0_11] : memref<1x1xf32, #tpu.memory_space<smem>>
    %26 = vector.shape_cast %24 : vector<8x1xf32> to vector<1x8x1xf32>
    %cst_12 = arith.constant dense<0.000000e+00> : vector<1xf32>
    %27 = vector.multi_reduction <add>, %26, %cst_12 [1, 2] : vector<1x8x1xf32> to vector<1xf32>
    %28 = vector.shape_cast %27 : vector<1xf32> to vector<1x1x1xf32>
    %29 = vector.extract %28[0, 0, 0] : f32 from vector<1x1x1xf32>
    %30 = arith.addf %25, %29 : f32
    %c0_13 = arith.constant 0 : index
    %c0_14 = arith.constant 0 : index
    %31 = memref.load %arg5[%c0_13, %c0_14] : memref<1x1xf32, #tpu.memory_space<smem>>
    memref.store %30, %arg5[%c0_13, %c0_14] : memref<1x1xf32, #tpu.memory_space<smem>>
    %c0_i32_15 = arith.constant 0 : i32
    %32 = arith.cmpi eq, %arg0, %c0_i32_15 : i32
    %33 = arith.extui %32 : i1 to i32
    %c0_i32_16 = arith.constant 0 : i32
    %34 = arith.cmpi ne, %33, %c0_i32_16 : i32
    scf.if %34 {
      %c0_17 = arith.constant 0 : index
      %c0_18 = arith.constant 0 : index
      %35 = memref.load %arg5[%c0_17, %c0_18] : memref<1x1xf32, #tpu.memory_space<smem>>
      %cst_19 = arith.constant 8.000000e+00 : f32
      %36 = arith.divf %35, %cst_19 : f32
      %c0_20 = arith.constant 0 : index
      %c0_21 = arith.constant 0 : index
      %37 = memref.load %arg4[%c0_20, %c0_21] : memref<1x1xf32, #tpu.memory_space<smem>>
      memref.store %36, %arg4[%c0_20, %c0_21] : memref<1x1xf32, #tpu.memory_space<smem>>
    } else {
    }
    return
  }
  func.func @transform_0(%arg0: i32) -> (i32, i32) {
    %c0_i32 = arith.constant 0 : i32
    %c0_i32_0 = arith.constant 0 : i32
    return %arg0, %c0_i32 : i32, i32
  }
  func.func @transform_1(%arg0: i32) -> (i32, i32) {
    %c0_i32 = arith.constant 0 : i32
    %c0_i32_0 = arith.constant 0 : i32
    return %arg0, %c0_i32 : i32, i32
  }
  func.func @transform_2(%arg0: i32) -> (i32, i32) {
    %c0_i32 = arith.constant 0 : i32
    %c0_i32_0 = arith.constant 0 : i32
    return %arg0, %c0_i32 : i32, i32
  }
  func.func @transform_3(%arg0: i32) -> (i32, i32) {
    %c0_i32 = arith.constant 0 : i32
    %c0_i32_0 = arith.constant 0 : i32
    %c0_i32_1 = arith.constant 0 : i32
    return %c0_i32, %c0_i32_0 : i32, i32
  }
}

</mosaic_0001>

<llo_original>
// kernel: tpu_custom_call.1
$region0: #{tpu_custom_call.1}
  #allocation0 [shape = 'u32[]', space=smem, size = 0x4, offset = 0x4, fixed_abs, tag = 'smem constant byte address 0x4 - core index']
  #allocation1 [shape = 'u32[144,128]{1,0:T(1,128)}', space=vmem, size = 0x12000, scoped, tag = 'internal scratch']
  #allocation2 [shape = 'f32[1,1]{1,0:T(1,128)}', space=smem, size = 0x200, scoped, tag = 'scratch operand']
  %s0 = inlined_call_operand.hbm [shape: f32[8,32], index: 0, kind: input, shape index: {}]
  %s1 = inlined_call_operand.hbm [shape: f32[8,32], index: 1, kind: input, shape index: {}]
  %s2 = inlined_call_operand.hbm [shape: f32[8,32], index: 2, kind: input, shape index: {}]
  %s3 = inlined_call_operand.hbm [shape: f32[1,1], index: 3, kind: output, shape index: {}]
  %s4 = sld [smem:[#allocation0]]
  $region42: #{tpu_custom_call.1} parent=0
    _
  %s6 = ssub.s32 1, %s4
  %s7 = scalar_select 0, %s6, %s4
  $region1: #{tpu_custom_call.1} parent=0
    #allocation3 [shape = 'u8[4096]{0}', space=vmem, size = 0x1000, scoped, tag = 'input window, operand 0, single buffered']
    #allocation4 [shape = 's32[1]{0}', space=sflag, size = 0x4, scoped, tag = 'scoped memory for tpu_custom_call.1']
    #allocation5 [shape = 's32[1]{0}', space=sflag, size = 0x4, scoped, tag = 'scoped memory for tpu_custom_call.1']
    #allocation6 [shape = 'u8[4096]{0}', space=vmem, size = 0x1000, scoped, tag = 'input window, operand 1, single buffered']
    #allocation7 [shape = 's32[1]{0}', space=sflag, size = 0x4, scoped, tag = 'scoped memory for tpu_custom_call.1']
    #allocation8 [shape = 'u8[4096]{0}', space=vmem, size = 0x1000, scoped, tag = 'input window, operand 2, single buffered']
    #allocation9 [shape = 'u8[512]{0}', space=smem, size = 0x200, scoped, tag = 'output window, operand 0, single buffered']
    %8 = vsyncpa [#allocation4], 0
    %9 = vsyncpa [#allocation7], 0
    %10 = vsyncpa [#allocation5], 0
    // Predicated region
    $region2: #{tpu_custom_call.1} parent=1 // pred_check
      _
    $region3: #{tpu_custom_call.1} parent=1 // pred_check_branch
      %12 = sbr.rel (0) target = $region5
    $region4: #{tpu_custom_call.1} parent=1 // pred_region
      %s14 = ssub.s32 128, 128
      %15 = vsyncadd [#allocation4], %s14
      %s17 = sshll.u32 [#allocation3], 4
      %s18 = int_to_ptr.vmem [resolvable:$true] %s17
      %20 = dma.hbm_to_vmem [thread:$0]  %s0, 128, %s18, [#allocation4]
    $region5: #{tpu_custom_call.1} parent=1 // pred_fallthru
      _
    // Predicated region
    $region6: #{tpu_custom_call.1} parent=1 // pred_check
      _
    $region7: #{tpu_custom_call.1} parent=1 // pred_check_branch
      %22 = sbr.rel (0) target = $region9
    $region8: #{tpu_custom_call.1} parent=1 // pred_region
      %s24 = ssub.s32 128, 128
      %25 = vsyncadd [#allocation7], %s24
      %s27 = sshll.u32 [#allocation6], 4
      %s28 = int_to_ptr.vmem [resolvable:$true] %s27
      %30 = dma.hbm_to_vmem [thread:$0]  %s1, 128, %s28, [#allocation7]
    $region9: #{tpu_custom_call.1} parent=1 // pred_fallthru
      _
    // Predicated region
    $region10: #{tpu_custom_call.1} parent=1 // pred_check
      _
    $region11: #{tpu_custom_call.1} parent=1 // pred_check_branch
      %32 = sbr.rel (0) target = $region13
    $region12: #{tpu_custom_call.1} parent=1 // pred_region
      %s34 = ssub.s32 128, 128
      %35 = vsyncadd [#allocation7], %s34
      %s37 = sshll.u32 [#allocation8], 4
      %s38 = int_to_ptr.vmem [resolvable:$true] %s37
      %40 = dma.hbm_to_vmem [thread:$0]  %s2, 128, %s38, [#allocation7]
    $region13: #{tpu_custom_call.1} parent=1 // pred_fallthru
      _
    // Predicated region
    $region14: #{tpu_custom_call.1} parent=1 // pred_check
      _
    $region15: #{tpu_custom_call.1} parent=1 // pred_check_branch
      %42 = sbr.rel (0) target = $region17
    $region16: #{tpu_custom_call.1} parent=1 // pred_region
      %43 = dma.done [#allocation4], 128
    $region17: #{tpu_custom_call.1} parent=1 // pred_fallthru
      _
    // Predicated region
    $region18: #{tpu_custom_call.1} parent=1 // pred_check
      _
    $region19: #{tpu_custom_call.1} parent=1 // pred_check_branch
      %45 = sbr.rel (0) target = $region21
    $region20: #{tpu_custom_call.1} parent=1 // pred_region
      %46 = dma.done [#allocation7], 128
    $region21: #{tpu_custom_call.1} parent=1 // pred_fallthru
      _
    // Predicated region
    $region22: #{tpu_custom_call.1} parent=1 // pred_check
      _
    $region23: #{tpu_custom_call.1} parent=1 // pred_check_branch
      %48 = sbr.rel (0) target = $region25
    $region24: #{tpu_custom_call.1} parent=1 // pred_region
      %49 = dma.done [#allocation7], 128
    $region25: #{tpu_custom_call.1} parent=1 // pred_fallthru
      _
    %p50 = scmp.eq.s32.totalorder 0, 0
    // Predicated region
    $region26: #{tpu_custom_call.1} parent=1 // pred_check
      %p51 = pneg %p50
    $region27: #{tpu_custom_call.1} parent=1 // pred_check_branch
      %53 = sbr.rel (%p51) target = $region29
    $region28: #{tpu_custom_call.1} parent=1 // pred_region
      %s54 = scalar_lea.smem [#allocation2], 0
      %55 = sst [smem:[%s54]] 0.0
    $region29: #{tpu_custom_call.1} parent=1 // pred_fallthru
      _
    %v56 = vld [vmem:[#allocation3] sm:$0xff]
    %v57 = vld [vmem:[#allocation6] sm:$0xff]
    %v58 = vsub.f32 %v56, %v57
    %v59 = vmul.f32 %v58, %v58
    %v60 = vld [vmem:[#allocation8] sm:$0xff]
    %v61 = vsub.f32 %v56, %v60
    %v62 = vmul.f32 %v61, %v61
    %v63 = vsub.f32 %v59, %v62
    %vm64 = vcmask 261120
    %v65 = vsel %vm64, %v63, 0.0
    %66 = vadd.xlane.f32.xlu0 %v65
    %v67 = vpop.xlane.xlu0 %66
    %v68 = vadd.f32 %v67, 1.0
    %v69 = vmax.f32 %v68, 0.0
    %s70 = smul.u32 0, 8
    %v71 = vlaneseq
    %v72 = vshrl.u32 %v71, 7
    %v73 = vstv %s70
    %v74 = vadd.s32 %v73, %v72
    %vm75 = vcmp.lt.s32.totalorder %v74, 8
    %v76 = vsel %vm75, %v69, 0.0
    %s77 = sld [smem:[#allocation2]]
    %vm78 = vcmask 7168
    %v79 = vsel %vm78, %v76, 0.0
    %80 = vadd.xlane.f32.xlu0 %v79
    %v81 = vpop.xlane.xlu0 %80
    %v82 = vrot.slane %v81, 4
    %v83 = vadd.f32 %v81, %v82
    %v84 = vrot.slane %v83, 2
    %v85 = vadd.f32 %v83, %v84
    %v86 = vrot.slane %v85, 1
    %v87 = vadd.f32 %v85, %v86
    %s88 = vtos %v87
    %s89 = sadd.f32 %s77, %s88
    %s90 = scalar_lea.smem [#allocation2], 0
    %91 = sst [smem:[%s90]] %s89
    // Predicated region
    $region30: #{tpu_custom_call.1} parent=1 // pred_check
      %p92 = pneg %p50
    $region31: #{tpu_custom_call.1} parent=1 // pred_check_branch
      %94 = sbr.rel (%p92) target = $region33
    $region32: #{tpu_custom_call.1} parent=1 // pred_region
      %s95 = sld [smem:[#allocation2]]
      %v96 = vrcp.pop 8.0
      %s97 = vtos %v96
      %s98 = smul.f32 %s95, %s97
      %s99 = scalar_lea.smem [#allocation9], 0
      %100 = sst [smem:[%s99]] %s98
    $region33: #{tpu_custom_call.1} parent=1 // pred_fallthru
      _
    // Predicated region
    $region34: #{tpu_custom_call.1} parent=1 // pred_check
      _
    $region35: #{tpu_custom_call.1} parent=1 // pred_check_branch
      %102 = sbr.rel (0) target = $region37
    $region36: #{tpu_custom_call.1} parent=1 // pred_region
      %s104 = ssub.s32 16, 16
      %105 = vsyncadd [#allocation5], %s104
      %108 = dma.smem_to_hbm [#allocation9], 16, %s3, [#allocation5]
    $region37: #{tpu_custom_call.1} parent=1 // pred_fallthru
      _
    // Predicated region
    $region38: #{tpu_custom_call.1} parent=1 // pred_check
      _
    $region39: #{tpu_custom_call.1} parent=1 // pred_check_branch
      %110 = sbr.rel (0) target = $region41
    $region40: #{tpu_custom_call.1} parent=1 // pred_region
      %111 = dma.done [#allocation5], 16
    $region41: #{tpu_custom_call.1} parent=1 // pred_fallthru
      _
    %112 = sfence
    %113 = vsyncpa [#allocation4], 1
    %114 = vsyncpa [#allocation7], 1
    %115 = vsyncpa [#allocation5], 1

</llo_original>
